<compile_context>
chip_gen: v6e
topology: v6e:2x2x1
jax: 0.10.0
libtpu: 0.0.40
codegen_flags: <defaults>
</compile_context>

<pallas_src>
import jax
import jax.numpy as jnp
from jax.experimental import pallas as pl
from jax.experimental.pallas import tpu as pltpu

_LANE = 128
_MIB = 1024 * 1024


def _round_up(x, m):
    return ((x + m - 1) // m) * m


def _hw_budget():
    """Return (block_payload_bytes, vmem_limit_bytes), generation-aware.

    Falls back to v7x-safe values (legal on every generation) if the hardware
    query is unavailable.
    """
    vmem_bytes = None
    try:
        info = pltpu.get_tpu_info()
        vmem_bytes = getattr(info, "vmem_capacity_bytes", None)
    except Exception:
        vmem_bytes = None
    if vmem_bytes is not None and vmem_bytes >= 100 * _MIB:
        # v5e / v6e: 128 MiB VMEM per TensorCore.
        return 16 * _MIB, 80 * _MIB
    # v7x (64 MiB VMEM) or unknown.
    return 8 * _MIB, 40 * _MIB


def _choose_tiles(n, d, itemsize, block_bytes):
    """Pick lane/sublane-aligned (tile_n, tile_d).

    Prefer full-D (fully contiguous) tiles and tile only over N; only tile D
    when even one sublane-group of rows would not fit the block budget.
    """
    sub = max(8, 32 // itemsize)           # sublane pack: f32->8, bf16->16, i8->32
    row_bytes = d * itemsize

    if sub * row_bytes <= block_bytes:
        tile_d = d                          # full feature dim: contiguous DMAs
        if n <= sub:
            tile_n = n                      # full (tiny) batch dim — always legal
        else:
            max_rows = (block_bytes // row_bytes) // sub * sub
            tile_n = min(max_rows, _round_up(n, sub))
            # Keep >= 2 blocks on the parallel N axis (v7x has 2 TensorCores).
            tile_n = min(tile_n, _round_up(pl.cdiv(n, 2), sub))
            tile_n = max(tile_n, sub)
    else:
        # Feature dim too large for even one sublane-group of rows: tile D too.
        tile_n = n if n <= sub else sub
        lane_budget = (block_bytes // (tile_n * itemsize)) // _LANE * _LANE
        tile_d = max(_LANE, min(lane_budget, (d // _LANE) * _LANE))
    return tile_n, tile_d


def _make_kernel(tile_n, scale_resident, num_n_blocks):
    def kernel(x_ref, scale_ref, o_ref):
        if scale_resident and num_n_blocks > 1:
            # Scale is resident for the whole batch; pick this block's rows.
            i = pl.program_id(0)
            start = pl.multiple_of(i * tile_n, tile_n)
            s = scale_ref[pl.ds(start, tile_n), :]
        else:
            s = scale_ref[...]
        # Elementwise hot path: (tile_n, 1) scale broadcast over (tile_n, tile_d).
        o_ref[...] = x_ref[...] * s
    return kernel


def drop_path_pallas(x, key, drop_prob: float = 0.0, training: bool = False,
                     scale_by_keep: bool = True, donate_x: bool = False):
    """Matches torch `drop_path(x, drop_prob, training, scale_by_keep)`."""
    if drop_prob == 0.0 or not training:
        return x
    keep_prob = 1.0 - drop_prob

    orig_shape = x.shape
    n = x.shape[0]
    x2 = x.reshape(n, -1)                   # (N, D): feature axis on lanes
    d = x2.shape[1]

    # Per-sample Bernoulli keep mask: O(N) scalars -> plain JAX glue, matching
    # `x.new_empty(shape).bernoulli_(keep_prob)` then an in-dtype div.
    scale = jax.random.bernoulli(key, p=keep_prob, shape=(n, 1)).astype(x.dtype)
    if keep_prob > 0.0 and scale_by_keep:
        scale = scale / jnp.asarray(keep_prob, dtype=x.dtype)

    itemsize = jnp.dtype(x.dtype).itemsize
    block_bytes, vmem_limit = _hw_budget()
    tile_n, tile_d = _choose_tiles(n, d, itemsize, block_bytes)
    grid = (pl.cdiv(n, tile_n), pl.cdiv(d, tile_d))

    # Keep the tiny (N, 1) scale resident in VMEM across the whole grid when it
    # is cheap (it lane-pads to 128 lanes); otherwise fall back to per-block DMA.
    n_pad = grid[0] * tile_n
    scale_resident = n_pad * _LANE * itemsize <= 2 * _MIB
    if scale_resident:
        if n_pad > n:
            scale = jnp.pad(scale, ((0, n_pad - n), (0, 0)))
        scale_spec = pl.BlockSpec((n_pad, 1), lambda i, j: (0, 0))
    else:
        scale_spec = pl.BlockSpec((tile_n, 1), lambda i, j: (i, 0))

    kernel = _make_kernel(tile_n, scale_resident, grid[0])

    out = pl.pallas_call(
        kernel,
        out_shape=jax.ShapeDtypeStruct((n, d), x.dtype),
        grid_spec=pltpu.PrefetchScalarGridSpec(
            num_scalar_prefetch=0,
            grid=grid,
            in_specs=[
                pl.BlockSpec((tile_n, tile_d), lambda i, j: (i, j)),  # x tile
                scale_spec,                                           # per-sample scale
            ],
            out_specs=pl.BlockSpec((tile_n, tile_d), lambda i, j: (i, j)),
        ),
        compiler_params=pltpu.CompilerParams(
            dimension_semantics=("parallel", "parallel"),
            vmem_limit_bytes=vmem_limit,
        ),
        input_output_aliases={0: 0} if donate_x else {},
    )(x2, scale)

    # No slice needed (out is exactly (N, D)); reshape back to NCHW is free.
    return out.reshape(orig_shape)


class DropPath:
    """Mirror of the PyTorch DropPath module (no learned parameters)."""

    def __init__(self, drop_prob: float = 0.0, scale_by_keep: bool = True):
        self.drop_prob = drop_prob
        self.scale_by_keep = scale_by_keep
        self.training = True  # torch default after .train()

    def __call__(self, x, key):
        return drop_path_pallas(x, key, self.drop_prob, self.training,
                                self.scale_by_keep)


if __name__ == "__main__":
    key = jax.random.PRNGKey(0)
    kx, kmask, kx2, kmask2 = jax.random.split(key, 4)

    drop_prob = 0.3
    keep_prob = 1.0 - drop_prob
    mod = DropPath(drop_prob=drop_prob, scale_by_keep=True)

    # Case 1: small NCHW feature map (lane-aligned D = 4*16*16 = 1024, N <= 8
    # so a single N block with the resident scale).
    x = jax.random.normal(kx, (2, 4, 16, 16), dtype=jnp.float32)
    y = jax.block_until_ready(mod(x, kmask))
    assert y.shape == x.shape and y.dtype == x.dtype
    ref_scale = (jax.random.bernoulli(kmask, p=keep_prob, shape=(2, 1))
                 .astype(x.dtype) / jnp.asarray(keep_prob, dtype=x.dtype))
    y_ref = x * ref_scale.reshape(2, 1, 1, 1)
    assert jnp.allclose(y, y_ref, atol=1e-6), "case 1 mismatch vs reference"

    # Each sample must be either all-zero (dropped) or x / keep_prob (kept).
    for i in range(x.shape[0]):
        kept = jnp.allclose(y[i], x[i] / keep_prob, atol=1e-5)
        dropped = jnp.allclose(y[i], 0.0, atol=1e-6)
        assert bool(kept) or bool(dropped), f"sample {i} has invalid drop-path output"

    # Case 2: non-lane-aligned feature dim (D = 3*10*10 = 300) with N = 16, so
    # the N axis splits into >= 2 blocks (exercises the resident-scale dynamic
    # slice and the partial last-lane block; no pre-pad / post-slice in wrapper).
    x2 = jax.random.normal(kx2, (16, 3, 10, 10), dtype=jnp.float32)
    y2 = jax.block_until_ready(mod(x2, kmask2))
    ref_scale2 = (jax.random.bernoulli(kmask2, p=keep_prob, shape=(16, 1))
                  .astype(x2.dtype) / jnp.asarray(keep_prob, dtype=x2.dtype))
    y2_ref = x2 * ref_scale2.reshape(16, 1, 1, 1)
    assert jnp.allclose(y2, y2_ref, atol=1e-6), "case 2 (multi-block N) mismatch"

    # Eval mode (training=False) is the identity, same as PyTorch.
    mod.training = False
    y_eval = jax.block_until_ready(mod(x, kmask))
    assert jnp.allclose(y_eval, x)

    print("KERNEL_OK")
</pallas_src>

<mosaic_0001>
module attributes {stable_mosaic.version = 11 : i64} {
  func.func @kernel(%arg0: i32, %arg1: i32, %arg2: memref<2x1024xf32, #tpu.memory_space<vmem>>, %arg3: memref<2x1xf32, #tpu.memory_space<vmem>>, %arg4: memref<2x1024xf32, #tpu.memory_space<vmem>>) attributes {dimension_semantics = [#tpu.dimension_semantics<parallel>, #tpu.dimension_semantics<parallel>], iteration_bounds = array<i64: 1, 1>, scalar_prefetch = 0 : i64, scratch_operands = 0 : i64, tpu.core_type = #tpu.core_type<tc>, window_params = [{transform_indices = @transform_0, window_bounds = array<i64: 2, 1024>}, {pipeline_mode = #tpu.pipeline_mode<synchronous>, transform_indices = @transform_1, window_bounds = array<i64: 2, 1>}, {transform_indices = @transform_2, window_bounds = array<i64: 2, 1024>}]} {
    %c0 = arith.constant 0 : index
    %c0_0 = arith.constant 0 : index
    %0 = vector.load %arg3[%c0, %c0_0] : memref<2x1xf32, #tpu.memory_space<vmem>>, vector<2x1xf32>
    %c0_1 = arith.constant 0 : index
    %c0_2 = arith.constant 0 : index
    %1 = vector.load %arg2[%c0_1, %c0_2] : memref<2x1024xf32, #tpu.memory_space<vmem>>, vector<2x1024xf32>
    %2 = vector.broadcast %0 : vector<2x1xf32> to vector<2x1024xf32>
    %3 = arith.mulf %1, %2 : vector<2x1024xf32>
    %c0_3 = arith.constant 0 : index
    %c0_4 = arith.constant 0 : index
    %4 = vector.load %arg4[%c0_3, %c0_4] : memref<2x1024xf32, #tpu.memory_space<vmem>>, vector<2x1024xf32>
    tpu.vector_store %arg4[%c0_3, %c0_4], %3 {strides = array<i32>} : memref<2x1024xf32, #tpu.memory_space<vmem>>, vector<2x1024xf32>,
    return
  }
  func.func @transform_0(%arg0: i32, %arg1: i32) -> (i32, i32) {
    %c0_i32 = arith.constant 0 : i32
    return %arg0, %arg1 : i32, i32
  }
  func.func @transform_1(%arg0: i32, %arg1: i32) -> (i32, i32) {
    %c0_i32 = arith.constant 0 : i32
    %c0_i32_0 = arith.constant 0 : i32
    %c0_i32_1 = arith.constant 0 : i32
    return %c0_i32, %c0_i32_0 : i32, i32
  }
  func.func @transform_2(%arg0: i32, %arg1: i32) -> (i32, i32) {
    %c0_i32 = arith.constant 0 : i32
    return %arg0, %arg1 : i32, i32
  }
}

</mosaic_0001>

<llo_original>
// kernel: tpu_custom_call.1
$region0: #{tpu_custom_call.1}
  #allocation0 [shape = 'u32[]', space=smem, size = 0x4, offset = 0x4, fixed_abs, tag = 'smem constant byte address 0x4 - core index']
  #allocation1 [shape = 'u32[144,128]{1,0:T(1,128)}', space=vmem, size = 0x12000, scoped, tag = 'internal scratch']
  %s0 = inlined_call_operand.hbm [shape: f32[2,1024], index: 0, kind: input, shape index: {}]
  %s1 = inlined_call_operand.vmem [shape: f32[2,1], index: 1, kind: input, shape index: {}]
  %s2 = inlined_call_operand.hbm [shape: f32[2,1024], index: 2, kind: output, shape index: {}]
  %s3 = sld [smem:[#allocation0]]
  $region22: #{tpu_custom_call.1} parent=0
    _
  %s5 = ssub.s32 1, %s3
  %s6 = scalar_select 0, %s5, %s3
  $region1: #{tpu_custom_call.1} parent=0
    #allocation2 [shape = 'u8[8192]{0}', space=vmem, size = 0x2000, scoped, tag = 'input window, operand 0, single buffered']
    #allocation3 [shape = 's32[1]{0}', space=sflag, size = 0x4, scoped, tag = 'scoped memory for tpu_custom_call.1']
    #allocation4 [shape = 's32[1]{0}', space=sflag, size = 0x4, scoped, tag = 'scoped memory for tpu_custom_call.1']
    #allocation5 [shape = 'u8[8192]{0}', space=vmem, size = 0x2000, scoped, tag = 'output window, operand 0, single buffered']
    %7 = vsyncpa [#allocation3], 0
    %8 = vsyncpa [#allocation4], 0
    // Predicated region
    $region2: #{tpu_custom_call.1} parent=1 // pred_check
      _
    $region3: #{tpu_custom_call.1} parent=1 // pred_check_branch
      %10 = sbr.rel (0) target = $region5
    $region4: #{tpu_custom_call.1} parent=1 // pred_region
      %s12 = ssub.s32 256, 256
      %13 = vsyncadd [#allocation3], %s12
      %s15 = sshll.u32 [#allocation2], 4
      %s16 = int_to_ptr.vmem [resolvable:$true] %s15
      %18 = dma.hbm_to_vmem [thread:$0]  %s0, 256, %s16, [#allocation3]
    $region5: #{tpu_custom_call.1} parent=1 // pred_fallthru
      _
    // Predicated region
    $region6: #{tpu_custom_call.1} parent=1 // pred_check
      _
    $region7: #{tpu_custom_call.1} parent=1 // pred_check_branch
      %20 = sbr.rel (0) target = $region9
    $region8: #{tpu_custom_call.1} parent=1 // pred_region
      _
    $region9: #{tpu_custom_call.1} parent=1 // pred_fallthru
      _
    // Predicated region
    $region10: #{tpu_custom_call.1} parent=1 // pred_check
      _
    $region11: #{tpu_custom_call.1} parent=1 // pred_check_branch
      %22 = sbr.rel (0) target = $region13
    $region12: #{tpu_custom_call.1} parent=1 // pred_region
      %23 = dma.done [#allocation3], 256
    $region13: #{tpu_custom_call.1} parent=1 // pred_fallthru
      _
    %v24 = vld [vmem:[%s1] sm:$0x3]
    %v25 = vld [vmem:[#allocation2] sm:$0xff]
    %v26 = vld [vmem:[#allocation2 + $0x8] sm:$0xff]
    %28 = vset.pattern.permute.xlu0 0
    %29 = vperm.xlu0 %28, %v24
    %v30 = vpop.permute.xlu0 %29
    %v32 = vunpack.c.l.s4 269488144
    %v33 = vunpack.c.0.s8 %v32
    %v34 = vlaneseq
    %v35 = vshrl.u32 %v34, 7
    %v36 = vsub.s32 %v33, %v35
    %v37 = vrot.slane %v30, %v36
    %v39 = vmul.f32 %v25, %v37
    %v40 = vmul.f32 %v26, %v37
    %41 = vst [vmem:[#allocation5] sm:$0xff] %v39
    %42 = vst [vmem:[#allocation5 + $0x8] sm:$0xff] %v40
    // Predicated region
    $region14: #{tpu_custom_call.1} parent=1 // pred_check
      _
    $region15: #{tpu_custom_call.1} parent=1 // pred_check_branch
      %44 = sbr.rel (0) target = $region17
    $region16: #{tpu_custom_call.1} parent=1 // pred_region
      %s46 = ssub.s32 256, 256
      %47 = vsyncadd [#allocation4], %s46
      %s49 = sshll.u32 [#allocation5], 4
      %s50 = int_to_ptr.vmem [resolvable:$true] %s49
      %52 = dma.vmem_to_hbm [thread:$0]  %s50, 256, %s2, [#allocation4]
    $region17: #{tpu_custom_call.1} parent=1 // pred_fallthru
      _
    // Predicated region
    $region18: #{tpu_custom_call.1} parent=1 // pred_check
      _
    $region19: #{tpu_custom_call.1} parent=1 // pred_check_branch
      %54 = sbr.rel (0) target = $region21
    $region20: #{tpu_custom_call.1} parent=1 // pred_region
      %55 = dma.done [#allocation4], 256
    $region21: #{tpu_custom_call.1} parent=1 // pred_fallthru
      _
    %56 = vsyncpa [#allocation3], 1
    %57 = vsyncpa [#allocation4], 1

</llo_original>
